<compile_context>
chip_gen: v7x
topology: tpu7x:2x2x1
jax: 0.10.0
libtpu: 0.0.40
codegen_flags: <defaults>
</compile_context>

<pallas_src>
import functools

import jax
import jax.numpy as jnp
from jax.experimental import pallas as pl
from jax.experimental.pallas import tpu as pltpu


# ---------------- helpers ----------------

def _round_up(x, m):
    return ((x + m - 1) // m) * m


def _vmem_budget_and_limit():
    """Per-chip (working-set budget, scoped-VMEM limit) in bytes."""
    phys = 64 * 1024 * 1024                      # conservative default (v7x-sized)
    try:
        phys = pltpu.get_tpu_info().vmem_capacity_bytes
    except Exception:
        pass
    if phys >= 128 * 1024 * 1024:                # v5e / v6e: 128 MiB physical
        return 48 * 1024 * 1024, 96 * 1024 * 1024
    return 24 * 1024 * 1024, 48 * 1024 * 1024    # v7x: 64 MiB physical


def _pick_tile_rows(nc, bytes_per_row, sub, budget):
    """Largest sublane-aligned row tile that fits the budget; keeps >=2 grid steps."""
    nc_pad = _round_up(nc, sub)
    max_rows = max(sub, (budget // bytes_per_row) // sub * sub)
    tile = min(nc_pad, max_rows)
    if nc_pad >= 2 * sub:                        # leave work for both v7x TCs
        tile = min(tile, max(sub, (nc_pad // 2) // sub * sub))
    return max(sub, (tile // sub) * sub)


# ---------------- kernels ----------------

def _contrast_kernel(x_ref, o_ref, *, alpha, inv_hw):
    """Fast path: one (tile_rows, HW_pad) tile -> row mean + affine, fused."""
    s = jnp.sum(x_ref[...].astype(jnp.float32), axis=-1, keepdims=True)
    mean = s * inv_hw
    y = x_ref[...].astype(jnp.float32) * alpha + (1.0 - alpha) * mean
    o_ref[...] = y.astype(o_ref.dtype)


def _contrast_kernel_tiled(x_ref, o_ref, sum_ref, *, alpha, inv_hw):
    """Fallback for huge H*W: grid = (rows, pass, spatial_chunk).

    pass 0 accumulates the row sums into a VMEM scratch; pass 1 applies the
    affine rescale chunk by chunk."""
    p = pl.program_id(1)
    j = pl.program_id(2)

    @pl.when(jnp.logical_and(p == 0, j == 0))
    def _():
        sum_ref[...] = jnp.zeros_like(sum_ref)

    @pl.when(p == 0)
    def _():
        sum_ref[...] += jnp.sum(x_ref[...].astype(jnp.float32), axis=-1,
                                keepdims=True)

    @pl.when(p == 1)
    def _():
        mean = sum_ref[...] * inv_hw
        y = x_ref[...].astype(jnp.float32) * alpha + (1.0 - alpha) * mean
        o_ref[...] = y.astype(o_ref.dtype)


# ---------------- wrapper ----------------

def contrast_enhancement_pallas(x_nchw, alpha=2.0, _vmem_budget=None):
    N, C, H, W = x_nchw.shape
    NC, HW = N * C, H * W
    dtype = x_nchw.dtype
    itemsize = jnp.dtype(dtype).itemsize
    sub = max(8, 32 // itemsize)                 # sublane packing per dtype

    budget, vmem_limit = _vmem_budget_and_limit()
    if _vmem_budget is not None:                 # test hook
        budget = int(_vmem_budget)

    alpha = float(alpha)
    inv_hw = 1.0 / float(HW)

    # channels-first flatten: rows = (n, c) pairs, lanes = spatial (no transpose).
    x2d = x_nchw.reshape(NC, HW)

    # lane-dense output: pad spatial to a multiple of 128 (zeros don't perturb
    # the sums because inv_hw uses the true HW).
    hw_pad = _round_up(HW, 128)
    # per block row: in + out double-buffered + f32 temporaries in the kernel.
    bytes_per_row = hw_pad * (4 * itemsize + 8)

    cost = pl.CostEstimate(flops=3 * NC * HW, transcendentals=0,
                           bytes_accessed=2 * NC * HW * itemsize)

    if sub * bytes_per_row <= budget:
        # -------- fast path: whole spatial extent in one tile, single pass --------
        tile_rows = _pick_tile_rows(NC, bytes_per_row, sub, budget)
        nc_pad = _round_up(NC, tile_rows)
        if nc_pad != NC or hw_pad != HW:
            x2d = jnp.pad(x2d, ((0, nc_pad - NC), (0, hw_pad - HW)))

        out2d = pl.pallas_call(
            functools.partial(_contrast_kernel, alpha=alpha, inv_hw=inv_hw),
            out_shape=jax.ShapeDtypeStruct((nc_pad, hw_pad), dtype),
            grid_spec=pltpu.PrefetchScalarGridSpec(
                num_scalar_prefetch=0,
                grid=(nc_pad // tile_rows,),
                in_specs=[pl.BlockSpec((tile_rows, hw_pad), lambda i: (i, 0))],
                out_specs=pl.BlockSpec((tile_rows, hw_pad), lambda i: (i, 0)),
            ),
            compiler_params=pltpu.CompilerParams(
                dimension_semantics=("parallel",),
                vmem_limit_bytes=vmem_limit),
            cost_estimate=cost,
        )(x2d)
    else:
        # -------- fallback: tile the spatial dim, two passes over it --------
        tile_rows = sub
        tile_hw = max(128,
                      (budget // (tile_rows * (4 * itemsize + 8))) // 128 * 128)
        tile_hw = min(tile_hw, hw_pad)
        hw_pad = _round_up(HW, tile_hw)
        nc_pad = _round_up(NC, tile_rows)
        if nc_pad != NC or hw_pad != HW:
            x2d = jnp.pad(x2d, ((0, nc_pad - NC), (0, hw_pad - HW)))

        out2d = pl.pallas_call(
            functools.partial(_contrast_kernel_tiled, alpha=alpha, inv_hw=inv_hw),
            out_shape=jax.ShapeDtypeStruct((nc_pad, hw_pad), dtype),
            grid_spec=pltpu.PrefetchScalarGridSpec(
                num_scalar_prefetch=0,
                grid=(nc_pad // tile_rows, 2, hw_pad // tile_hw),
                in_specs=[pl.BlockSpec((tile_rows, tile_hw),
                                       lambda i, p, j: (i, j))],
                # j*p parks the output block at (i, 0) during the accumulation
                # pass -> no wasted write-backs to HBM.
                out_specs=pl.BlockSpec((tile_rows, tile_hw),
                                       lambda i, p, j: (i, j * p)),
                scratch_shapes=[pltpu.VMEM((tile_rows, 1), jnp.float32)],
            ),
            compiler_params=pltpu.CompilerParams(
                dimension_semantics=("parallel", "arbitrary", "arbitrary"),
                vmem_limit_bytes=vmem_limit),
            cost_estimate=cost,
        )(x2d)

    return out2d[:NC, :HW].reshape(N, C, H, W)


# ---------------- plain-JAX reference ----------------

def contrast_enhancement_ref(x, alpha=2.0):
    mean = jnp.mean(x, axis=(2, 3), keepdims=True)
    return (x - mean) * alpha + mean


if __name__ == "__main__":
    key = jax.random.PRNGKey(0)

    N, C, H, W = 2, 4, 16, 16
    alpha = 2.0
    x = jax.random.normal(key, (N, C, H, W), jnp.float32)
    ref = contrast_enhancement_ref(x, alpha)

    # fast path (the one used for all normal shapes)
    fwd = jax.jit(functools.partial(contrast_enhancement_pallas, alpha=alpha))
    out = jax.block_until_ready(fwd(x))
    assert out.shape == (N, C, H, W)
    err = float(jnp.max(jnp.abs(out - ref)))
    assert err < 1e-5, f"fast path mismatch vs reference: max abs err = {err}"

    # spatial-tiled fallback path (forced via a tiny budget) -- same semantics
    fwd_tiled = jax.jit(functools.partial(contrast_enhancement_pallas,
                                          alpha=alpha, _vmem_budget=32 * 1024))
    out_t = jax.block_until_ready(fwd_tiled(x))
    err_t = float(jnp.max(jnp.abs(out_t - ref)))
    assert err_t < 1e-5, f"tiled path mismatch vs reference: max abs err = {err_t}"

    print("KERNEL_OK")
</pallas_src>

<mosaic_0001>
module attributes {stable_mosaic.version = 11 : i64} {
  func.func @_contrast_kernel(%arg0: i32, %arg1: memref<8x256xf32, #tpu.memory_space<vmem>>, %arg2: memref<8x256xf32, #tpu.memory_space<vmem>>) attributes {dimension_semantics = [#tpu.dimension_semantics<parallel>], iteration_bounds = array<i64: 1>, scalar_prefetch = 0 : i64, scratch_operands = 0 : i64, tpu.core_type = #tpu.core_type<tc>, window_params = [{transform_indices = @transform_0, window_bounds = array<i64: 8, 256>}, {transform_indices = @transform_1, window_bounds = array<i64: 8, 256>}]} {
    %c0 = arith.constant 0 : index
    %c0_0 = arith.constant 0 : index
    %0 = vector.load %arg1[%c0, %c0_0] : memref<8x256xf32, #tpu.memory_space<vmem>>, vector<8x256xf32>
    %cst = arith.constant dense<0.000000e+00> : vector<8xf32>
    %1 = vector.multi_reduction <add>, %0, %cst [1] : vector<8x256xf32> to vector<8xf32>
    %2 = vector.shape_cast %1 : vector<8xf32> to vector<8x1xf32>
    %cst_1 = arith.constant 3.906250e-03 : f32
    %3 = vector.broadcast %cst_1 : f32 to vector<8x1xf32>
    %4 = arith.mulf %2, %3 : vector<8x1xf32>
    %c0_2 = arith.constant 0 : index
    %c0_3 = arith.constant 0 : index
    %5 = vector.load %arg1[%c0_2, %c0_3] : memref<8x256xf32, #tpu.memory_space<vmem>>, vector<8x256xf32>
    %cst_4 = arith.constant 2.000000e+00 : f32
    %6 = vector.broadcast %cst_4 : f32 to vector<8x256xf32>
    %7 = arith.mulf %5, %6 : vector<8x256xf32>
    %cst_5 = arith.constant -1.000000e+00 : f32
    %8 = vector.broadcast %cst_5 : f32 to vector<8x1xf32>
    %9 = arith.mulf %8, %4 : vector<8x1xf32>
    %10 = vector.broadcast %9 : vector<8x1xf32> to vector<8x256xf32>
    %11 = arith.addf %7, %10 : vector<8x256xf32>
    %c0_6 = arith.constant 0 : index
    %c0_7 = arith.constant 0 : index
    %12 = vector.load %arg2[%c0_6, %c0_7] : memref<8x256xf32, #tpu.memory_space<vmem>>, vector<8x256xf32>
    tpu.vector_store %arg2[%c0_6, %c0_7], %11 {strides = array<i32>} : memref<8x256xf32, #tpu.memory_space<vmem>>, vector<8x256xf32>,
    return
  }
  func.func @transform_0(%arg0: i32) -> (i32, i32) {
    %c0_i32 = arith.constant 0 : i32
    %c0_i32_0 = arith.constant 0 : i32
    return %arg0, %c0_i32 : i32, i32
  }
  func.func @transform_1(%arg0: i32) -> (i32, i32) {
    %c0_i32 = arith.constant 0 : i32
    %c0_i32_0 = arith.constant 0 : i32
    return %arg0, %c0_i32 : i32, i32
  }
}

</mosaic_0001>

<llo_original>
// kernel: contrast_enhancement_pallas.1
$region0: #{contrast_enhancement_pallas.1}
  #allocation0 [shape = 'u32[]', space=smem, size = 0x4, offset = 0x4, fixed_abs, tag = 'smem constant byte address 0x4 - core index']
  #allocation1 [shape = 'u32[144,128]{1,0:T(1,128)}', space=vmem, size = 0x12000, scoped, tag = 'internal scratch']
  %s0 = inlined_call_operand.vmem [shape: f32[8,256], index: 0, kind: input, shape index: {}]
  %s1 = inlined_call_operand.vmem [shape: f32[8,256], index: 1, kind: output, shape index: {}]
  %s2 = sld [smem:[#allocation0]]
  $region14: #{contrast_enhancement_pallas.1} parent=0
    _
  %s4 = ssub.s32 1, %s2
  %s5 = scalar_select 0, %s4, %s2
  // Predicated region
  $region2: #{contrast_enhancement_pallas.1} parent=0 // pred_check
    _
  $region3: #{contrast_enhancement_pallas.1} parent=0 // pred_check_branch
    %7 = sbr.rel (0) target = $region5
  $region4: #{contrast_enhancement_pallas.1} parent=0 // pred_region
    _
  $region5: #{contrast_enhancement_pallas.1} parent=0 // pred_fallthru
    _
  %v8 = vld [vmem:[%s0] sm:$0xff]
  %v9 = vld [vmem:[%s0 + $0x8] sm:$0xff]
  %v10 = vadd.f32 %v8, %v9
  %11 = vadd.xlane.f32.xlu0 %v10
  %v12 = vpop.xlane.xlu0 %11
  %v13 = vmul.f32 %v12, 0.00390625
  %v14 = vmul.f32 %v8, 2.0
  %v15 = vmul.f32 %v9, 2.0
  %v16 = vmul.f32 %v13, -1.0
  %v17 = vadd.f32 %v14, %v16
  %v18 = vadd.f32 %v15, %v16
  %19 = vst [vmem:[%s1] sm:$0xff] %v17
  %20 = vst [vmem:[%s1 + $0x8] sm:$0xff] %v18
  // Predicated region
  $region6: #{contrast_enhancement_pallas.1} parent=0 // pred_check
    _
  $region7: #{contrast_enhancement_pallas.1} parent=0 // pred_check_branch
    %22 = sbr.rel (0) target = $region9
  $region8: #{contrast_enhancement_pallas.1} parent=0 // pred_region
    _
  $region9: #{contrast_enhancement_pallas.1} parent=0 // pred_fallthru
    _
  // Predicated region
  $region10: #{contrast_enhancement_pallas.1} parent=0 // pred_check
    _
  $region11: #{contrast_enhancement_pallas.1} parent=0 // pred_check_branch
    %24 = sbr.rel (0) target = $region13
  $region12: #{contrast_enhancement_pallas.1} parent=0 // pred_region
    _
  $region13: #{contrast_enhancement_pallas.1} parent=0 // pred_fallthru
    _

</llo_original>
